<compile_context>
chip_gen: v7x
topology: tpu7x:2x2x1
jax: 0.10.0
libtpu: 0.0.40
codegen_flags: <defaults>
</compile_context>

<pallas_src>
import jax
import jax.numpy as jnp
from jax.experimental import pallas as pl
from jax.experimental.pallas import tpu as pltpu


# ------------------------------- Pallas kernel -------------------------------
def _same_pad_copy_kernel(x_ref, o_ref):
    # Drop any trailing pad column(s) present in the input block but not in the
    # output block; when the block widths match this is a full-block copy and
    # the pad column is removed by the grid/block geometry instead.
    o_ref[...] = x_ref[:, : o_ref.shape[-1]]


# --------------------------------- helpers ------------------------------------
def _round_up(v, m):
    return ((v + m - 1) // m) * m


def _round_down(v, m):
    return (v // m) * m


def _cdiv(a, b):
    return -(-a // b)


def _make_spec(block_shape, index_map, deep):
    if deep:
        try:
            return pl.BlockSpec(block_shape, index_map, pipeline_mode=pl.Buffered(3))
        except TypeError:
            # Older jax without pipeline_mode on BlockSpec: fall back to default depth.
            pass
    return pl.BlockSpec(block_shape, index_map)


# --------------------------------- wrapper -----------------------------------
def conformer_same_pad_layer(
    hidden_states,
    num_conv_pos_embeddings,
    *,
    block_budget_bytes=None,     # per-grid-step bytes of blocks (in + out)
    min_pallas_bytes=1 << 20,    # below this, XLA's slice is already optimal
    min_pallas_t=128,            # below this lane width, stores are mostly masked
):
    """hidden_states: (B, C, T) -> (B, C, T - num_pad_remove).

    Matches torch: hidden_states[:, :, :-1] when num_conv_pos_embeddings is even,
    identity otherwise.
    """
    num_pad_remove = 1 if num_conv_pos_embeddings % 2 == 0 else 0
    if num_pad_remove == 0:
        # Identity — avoid a pointless HBM round trip.
        return hidden_states

    B, C, T = hidden_states.shape
    t_out = T - num_pad_remove
    M = B * C
    itemsize = jnp.dtype(hidden_states.dtype).itemsize
    total_bytes = M * T * itemsize

    # Tiny-tensor fast path: per-grid-step (~0.35 us) + launch overhead and
    # heavily masked lane stores make Pallas a loss here; XLA's slice fuses
    # with neighbouring ops and is already at roofline.
    if t_out <= 0 or M == 0 or total_bytes < min_pallas_bytes or t_out < min_pallas_t:
        return hidden_states[:, :, :t_out]

    # dtype-aware sublane multiple (bf16 packs 2 rows / sublane, int8/fp8 pack 4).
    sublane = {1: 32, 2: 16}.get(itemsize, 8)

    # VMEM budget derived from the actual part (v7x: 64 MiB/TC, v5e/v6e: 128 MiB).
    try:
        vmem_cap = int(pltpu.get_tpu_info().vmem_capacity_bytes)
    except Exception:
        vmem_cap = 64 * 1024 * 1024  # conservative fallback (v7x per-TensorCore)
    vmem_ceiling = vmem_cap // 2     # leave headroom for Mosaic internal scratch
    if block_budget_bytes is None:
        block_budget_bytes = min(16 * 1024 * 1024, vmem_ceiling // 2)

    # Row-tile cap: never exceed M (rounded up), and keep >= 2 row blocks when
    # possible so a "parallel" row axis shards across both v7x TensorCores.
    tm_cap = _round_up(M, sublane)
    if M >= 2 * sublane:
        tm_cap = min(tm_cap, _round_up(_cdiv(M, 2), sublane))

    bytes_per_full_row = (T + t_out) * itemsize
    tm_full = _round_down(block_budget_bytes // bytes_per_full_row, sublane)

    if tm_full >= sublane and tm_full >= min(512, tm_cap):
        # ---- Case B: full-T blocks; pad column dropped by a static slice. ----
        tm = max(sublane, min(tm_full, tm_cap))
        grid = (_cdiv(M, tm),)
        in_block, out_block = (tm, T), (tm, t_out)
        in_map = out_map = lambda i: (i, 0)
        dims = ("parallel",)
    else:
        # ---- Case A: tile the time axis too (lane tiles multiple of 128). ----
        # The trailing pad column is dropped by ragged-edge store masking.
        tt = min(512, _round_up(t_out, 128))
        tm = _round_down(block_budget_bytes // (2 * tt * itemsize), sublane)
        tm = max(sublane, min(tm, tm_cap))
        grid = (_cdiv(M, tm), _cdiv(t_out, tt))
        in_block, out_block = (tm, tt), (tm, tt)
        in_map = out_map = lambda i, j: (i, j)
        dims = ("parallel", "parallel")

    in_block_bytes = in_block[0] * in_block[1] * itemsize
    out_block_bytes = out_block[0] * out_block[1] * itemsize
    n_steps = 1
    for g in grid:
        n_steps *= g
    # The body does no compute: with small blocks the inter-step DMA latency is
    # exposed, so deepen the pipeline to 3 buffers (negligible VMEM cost).
    deep = max(in_block_bytes, out_block_bytes) < 512 * 1024 and n_steps >= 3
    bufs = 3 if deep else 2

    needed = bufs * (in_block_bytes + out_block_bytes)
    vmem_limit = int(min(max(needed * 2, 4 * 1024 * 1024), vmem_ceiling))

    x2 = hidden_states.reshape(M, T)
    out = pl.pallas_call(
        _same_pad_copy_kernel,
        out_shape=jax.ShapeDtypeStruct((M, t_out), hidden_states.dtype),
        grid=grid,
        in_specs=[_make_spec(in_block, in_map, deep)],
        out_specs=_make_spec(out_block, out_map, deep),
        compiler_params=pltpu.CompilerParams(
            dimension_semantics=dims,
            vmem_limit_bytes=vmem_limit,
        ),
        cost_estimate=pl.CostEstimate(
            flops=0,
            transcendentals=0,
            bytes_accessed=(M * T + M * t_out) * itemsize,
        ),
    )(x2)
    return out.reshape(B, C, t_out)


# ----------------------------------- main -------------------------------------
if __name__ == "__main__":
    key = jax.random.PRNGKey(0)
    k1, k2 = jax.random.split(key)

    # (batch, hidden_size, seq_len) as seen on the conv-pos-embedding path.
    B, C, T = 2, 64, 256
    x = jax.random.normal(k1, (B, C, T), jnp.float32)

    # --- 1) even -> drop last step; forced Pallas path, full-T blocks (case B) ---
    y = conformer_same_pad_layer(x, 128, min_pallas_bytes=0, min_pallas_t=0)
    y = jax.block_until_ready(y)
    ref = x[:, :, :-1]
    assert y.shape == (B, C, T - 1), (y.shape, (B, C, T - 1))
    assert jnp.array_equal(y, ref)

    # --- 2) even, bf16, tiny budget -> column-tiled path (case A, ragged edges) ---
    B2, C2, T2 = 2, 48, 640
    x2 = jax.random.normal(k2, (B2, C2, T2), jnp.float32).astype(jnp.bfloat16)
    y2 = conformer_same_pad_layer(
        x2, 30, min_pallas_bytes=0, min_pallas_t=0, block_budget_bytes=32 * 1024
    )
    y2 = jax.block_until_ready(y2)
    assert y2.shape == (B2, C2, T2 - 1)
    assert jnp.array_equal(y2, x2[:, :, :-1])

    # --- 3) tiny tensor -> XLA fast path (default thresholds) ---------------------
    xs = x[:, :4, :16]
    y3 = jax.block_until_ready(conformer_same_pad_layer(xs, 2))
    assert y3.shape == (B, 4, 15)
    assert jnp.array_equal(y3, xs[:, :, :-1])

    # --- 4) odd num_conv_pos_embeddings -> identity --------------------------------
    y4 = jax.block_until_ready(conformer_same_pad_layer(x, 129))
    assert y4.shape == x.shape
    assert jnp.array_equal(y4, x)

    print("KERNEL_OK")
</pallas_src>

<mosaic_0001>
module attributes {stable_mosaic.version = 11 : i64} {
  func.func @_same_pad_copy_kernel(%arg0: i32, %arg1: memref<64x256xf32, #tpu.memory_space<vmem>>, %arg2: memref<64x255xf32, #tpu.memory_space<vmem>>) attributes {dimension_semantics = [#tpu.dimension_semantics<parallel>], iteration_bounds = array<i64: 2>, scalar_prefetch = 0 : i64, scratch_operands = 0 : i64, tpu.core_type = #tpu.core_type<tc>, window_params = [{transform_indices = @transform_0, window_bounds = array<i64: 64, 256>}, {transform_indices = @transform_1, window_bounds = array<i64: 64, 255>}]} {
    %c0 = arith.constant 0 : index
    %c0_0 = arith.constant 0 : index
    %0 = vector.load %arg1[%c0, %c0_0] : memref<64x256xf32, #tpu.memory_space<vmem>>, vector<64x255xf32>
    %c0_1 = arith.constant 0 : index
    %c0_2 = arith.constant 0 : index
    %1 = vector.load %arg2[%c0_1, %c0_2] : memref<64x255xf32, #tpu.memory_space<vmem>>, vector<64x255xf32>
    tpu.vector_store %arg2[%c0_1, %c0_2], %0 {strides = array<i32>} : memref<64x255xf32, #tpu.memory_space<vmem>>, vector<64x255xf32>,
    return
  }
  func.func @transform_0(%arg0: i32) -> (i32, i32) {
    %c0_i32 = arith.constant 0 : i32
    %c0_i32_0 = arith.constant 0 : i32
    return %arg0, %c0_i32 : i32, i32
  }
  func.func @transform_1(%arg0: i32) -> (i32, i32) {
    %c0_i32 = arith.constant 0 : i32
    %c0_i32_0 = arith.constant 0 : i32
    return %arg0, %c0_i32 : i32, i32
  }
}

</mosaic_0001>

<llo_original>
// kernel: tpu_custom_call.1
$region0: #{tpu_custom_call.1}
  #allocation0 [shape = 'u32[]', space=smem, size = 0x4, offset = 0x4, fixed_abs, tag = 'smem constant byte address 0x4 - core index']
  #allocation1 [shape = 'u32[144,128]{1,0:T(1,128)}', space=vmem, size = 0x12000, scoped, tag = 'internal scratch']
  %s0 = inlined_call_operand.hbm [shape: f32[128,256], index: 0, kind: input, shape index: {}]
  %s1 = inlined_call_operand.hbm [shape: f32[128,255], index: 1, kind: output, shape index: {}]
  %s2 = sld [smem:[#allocation0]]
  $region41: #{tpu_custom_call.1} parent=0
    _
  %s4 = ssub.s32 1, %s2
  %s5 = scalar_select 0, %s4, %s2
  $region1: #{tpu_custom_call.1} parent=0
    #allocation2 [shape = 'u8[131072]{0}', space=vmem, size = 0x20000, scoped, tag = 'input window, operand 0']
    #allocation3 [shape = 's32[2]{0}', space=sflag, size = 0x8, scoped, tag = 'scoped memory for tpu_custom_call.1']
    #allocation4 [shape = 's32[2]{0}', space=sflag, size = 0x8, scoped, tag = 'scoped memory for tpu_custom_call.1']
    #allocation5 [shape = 'u8[131072]{0}', space=vmem, size = 0x20000, scoped, tag = 'output window, operand 0']
    %6 = vsyncpa [#allocation3], 0
    %s7 = scalar_lea.sflag [#allocation3], 1
    %8 = vsyncpa %s7, 0
    %9 = vsyncpa [#allocation4], 0
    %s10 = scalar_lea.sflag [#allocation4], 1
    %11 = vsyncpa %s10, 0
    loop: start=0, step=1, limit=4
    $region2: #{tpu_custom_call.1} parent=1 // loop_pre_header
      _
    $region3: #{tpu_custom_call.1} parent=1 // loop_header
      %s13 = sphi 0, %s17
      %p14 = scmp.ge.s32.totalorder %s13, 4
      %s23 = sphi 0, %s25
      %s26 = sphi 0, %s23
      %s27 = sphi 0, %s26
      %s43 = sphi 0, %s27
      %s49 = sphi 0, %s51
      %s52 = sphi 0, %s49
      %s53 = sphi 0, %s52
      %s69 = sphi 0, %s53
    $region4: #{tpu_custom_call.1} parent=1 // loop_header_branch
      %16 = sbr.rel (%p14) target = $region8
    $region5: #{tpu_custom_call.1} parent=1 // loop_body
      %s18 = ssub.s32 %s13, 1
      %s19 = ssub.s32 %s13, 2
      %s20 = sadd.s32 %s13, 1
      %s21 = ssub.s32 %s13, %s20
      %p22 = scmp.eq.s32.totalorder %s21, 0
      %s24 = sadd.s32 %s23, 1
      %s25 = scalar_select %p22, %s23, %s24
      %p28 = pneg %p22
      %p29 = scmp.eq.s32.totalorder %s13, 1
      %p30 = por %p28, %p29
      %p31 = scmp.ne.s32.totalorder %s23, %s26
      %p32 = scmp.eq.s32.totalorder %s13, 0
      %p33 = por %p31, %p32
      %p34 = scmp.ne.s32.totalorder %s23, %s26
      %p35 = scmp.eq.s32.totalorder %s18, 1
      %p36 = por %p34, %p35
      %p37 = scmp.ne.s32.totalorder %s26, %s27
      %p38 = scmp.eq.s32.totalorder %s18, 0
      %p39 = por %p37, %p38
      %p40 = scmp.ne.s32.totalorder %s26, %s27
      %p41 = scmp.eq.s32.totalorder %s19, 1
      %p42 = por %p40, %p41
      %p44 = scmp.ne.s32.totalorder %s27, %s43
      %p45 = scmp.eq.s32.totalorder %s19, 0
      %p46 = por %p44, %p45
      %s47 = ssub.s32 %s13, %s20
      %p48 = scmp.eq.s32.totalorder %s47, 0
      %s50 = sadd.s32 %s49, 1
      %s51 = scalar_select %p48, %s49, %s50
      %p54 = pneg %p48
      %p55 = scmp.eq.s32.totalorder %s13, 1
      %p56 = por %p54, %p55
      %p57 = scmp.ne.s32.totalorder %s49, %s52
      %p58 = scmp.eq.s32.totalorder %s13, 0
      %p59 = por %p57, %p58
      %p60 = scmp.ne.s32.totalorder %s49, %s52
      %p61 = scmp.eq.s32.totalorder %s18, 1
      %p62 = por %p60, %p61
      %p63 = scmp.ne.s32.totalorder %s52, %s53
      %p64 = scmp.eq.s32.totalorder %s18, 0
      %p65 = por %p63, %p64
      %p66 = scmp.ne.s32.totalorder %s52, %s53
      %p67 = scmp.eq.s32.totalorder %s19, 1
      %p68 = por %p66, %p67
      %p70 = scmp.ne.s32.totalorder %s53, %s69
      %p71 = scmp.eq.s32.totalorder %s19, 0
      %p72 = por %p70, %p71
      %p73 = scmp.le.s32.totalorder 1, %s13
      %p74 = scmp.lt.s32.totalorder %s13, 3
      %p75 = pnand %p73, %p74
      %p76 = pneg %p75
      // Predicated region
      $region9: #{tpu_custom_call.1} parent=5 // pred_check
        _
      $region10: #{tpu_custom_call.1} parent=5 // pred_check_branch
        %78 = sbr.rel (%p75) target = $region12
      $region11: #{tpu_custom_call.1} parent=5 // pred_region
        %s79 = ssub.s32 %s13, 1
      $region12: #{tpu_custom_call.1} parent=5 // pred_fallthru
        _
      %p80 = scmp.lt.s32.totalorder %s13, 2
      // Predicated region
      $region13: #{tpu_custom_call.1} parent=5 // pred_check
        %p81 = pneg %p80
      $region14: #{tpu_custom_call.1} parent=5 // pred_check_branch
        %83 = sbr.rel (%p81) target = $region16
      $region15: #{tpu_custom_call.1} parent=5 // pred_region
        // Predicated region
        $region17: #{tpu_custom_call.1} parent=15 // pred_check
          %p84 = pneg %p33
        $region18: #{tpu_custom_call.1} parent=15 // pred_check_branch
          %86 = sbr.rel (%p84) target = $region20
        $region19: #{tpu_custom_call.1} parent=15 // pred_region
          %s87 = sand.u32 %s23, 1
          %s88 = scalar_lea.sflag [#allocation3], %s87
          %s89 = sand.u32 %s23, 1
          %s90 = smul.addr %s89, 128
          %s91 = scalar_lea.vmem [#allocation2], %s90
          %s92 = smul.u32 8, %s13
          %s94 = ssub.s32 2048, 2048
          %95 = vsyncadd %s88, %s94
          %s96 = smul.addr %s92, 2
          %s97 = smul.addr %s96, 128
          %s98 = scalar_lea.hbm %s0, %s97
          %s99 = sshll.u32 %s91, 4
          %s100 = int_to_ptr.vmem [resolvable:$true] %s99
          %105 = dma.hbm_to_vmem [thread:$0]  %s98, 2048, %s100, %s88, 256, 256, 16
        $region20: #{tpu_custom_call.1} parent=15 // pred_fallthru
          _
      $region16: #{tpu_custom_call.1} parent=5 // pred_fallthru
        _
      %p106 = scmp.le.s32.totalorder 1, %s13
      %p107 = scmp.lt.s32.totalorder %s13, 3
      %p108 = pnand %p106, %p107
      %p109 = pneg %p108
      // Predicated region
      $region21: #{tpu_custom_call.1} parent=5 // pred_check
        _
      $region22: #{tpu_custom_call.1} parent=5 // pred_check_branch
        %111 = sbr.rel (%p108) target = $region24
      $region23: #{tpu_custom_call.1} parent=5 // pred_region
        %s112 = ssub.s32 %s13, 1
        %s113 = sand.u32 %s26, 1
        %s114 = scalar_lea.sflag [#allocation3], %s113
        %s115 = sand.u32 %s26, 1
        %s116 = smul.addr %s115, 128
        %s117 = scalar_lea.vmem [#allocation2], %s116
        // Predicated region
        $region25: #{tpu_custom_call.1} parent=23 // pred_check
          %p118 = pneg %p39
        $region26: #{tpu_custom_call.1} parent=23 // pred_check_branch
          %120 = sbr.rel (%p118) target = $region28
        $region27: #{tpu_custom_call.1} parent=23 // pred_region
          %121 = dma.done %s114, 2048
        $region28: #{tpu_custom_call.1} parent=23 // pred_fallthru
          _
        %s122 = sand.u32 %s26, 1
        %s123 = scalar_lea.sflag [#allocation3], %s122
        %s124 = sand.u32 %s26, 1
        %s125 = smul.addr %s124, 128
        %s126 = scalar_lea.vmem [#allocation2], %s125
        %p127 = pneg %p39
        %p128 = pneg %p36
        %p129 = pneg %p65
        %p130 = pneg %p62
        %s131 = sand.u32 %s52, 1
        %s132 = scalar_lea.sflag [#allocation4], %s131
        %s133 = sand.u32 %s52, 1
        %s134 = smul.addr %s133, 128
        %s135 = scalar_lea.vmem [#allocation5], %s134
        %s136 = smul.u32 8, %s18
        %s137 = smul.u32 8, %s18
        %v138 = vld [vmem:[%s117] sm:$0xff]
        %v139 = vld [vmem:[%s117 + $0x8] sm:$0xff]
        %v140 = vld [vmem:[%s117 + $0x10] sm:$0xff]
        %v141 = vld [vmem:[%s117 + $0x18] sm:$0xff]
        %v142 = vld [vmem:[%s117 + $0x20] sm:$0xff]
        %v143 = vld [vmem:[%s117 + $0x28] sm:$0xff]
        %v144 = vld [vmem:[%s117 + $0x30] sm:$0xff]
        %v145 = vld [vmem:[%s117 + $0x38] sm:$0xff]
        %v146 = vld [vmem:[%s117 + $0x40] sm:$0xff]
        %v147 = vld [vmem:[%s117 + $0x48] sm:$0xff]
        %v148 = vld [vmem:[%s117 + $0x50] sm:$0xff]
        %v149 = vld [vmem:[%s117 + $0x58] sm:$0xff]
        %v150 = vld [vmem:[%s117 + $0x60] sm:$0xff]
        %v151 = vld [vmem:[%s117 + $0x68] sm:$0xff]
        %v152 = vld [vmem:[%s117 + $0x70] sm:$0xff]
        %v153 = vld [vmem:[%s117 + $0x78] sm:$0xff]
        %154 = vst [vmem:[%s135] sm:$0xff] %v138
        %vm155 = vcmask 1039360
        %156 = vst.msk [vmem:[%s135 + $0x8] sm:$0xff] %vm155, %v139
        %157 = vst [vmem:[%s135 + $0x10] sm:$0xff] %v140
        %158 = vst.msk [vmem:[%s135 + $0x18] sm:$0xff] %vm155, %v141
        %159 = vst [vmem:[%s135 + $0x20] sm:$0xff] %v142
        %160 = vst.msk [vmem:[%s135 + $0x28] sm:$0xff] %vm155, %v143
        %161 = vst [vmem:[%s135 + $0x30] sm:$0xff] %v144
        %162 = vst.msk [vmem:[%s135 + $0x38] sm:$0xff] %vm155, %v145
        %163 = vst [vmem:[%s135 + $0x40] sm:$0xff] %v146
        %164 = vst.msk [vmem:[%s135 + $0x48] sm:$0xff] %vm155, %v147
        %165 = vst [vmem:[%s135 + $0x50] sm:$0xff] %v148
        %166 = vst.msk [vmem:[%s135 + $0x58] sm:$0xff] %vm155, %v149
        %167 = vst [vmem:[%s135 + $0x60] sm:$0xff] %v150
        %168 = vst.msk [vmem:[%s135 + $0x68] sm:$0xff] %vm155, %v151
        %169 = vst [vmem:[%s135 + $0x70] sm:$0xff] %v152
        %170 = vst.msk [vmem:[%s135 + $0x78] sm:$0xff] %vm155, %v153
        %s171 = sand.u32 %s52, 1
        %s172 = scalar_lea.sflag [#allocation4], %s171
        %s173 = sand.u32 %s52, 1
        %s174 = smul.addr %s173, 128
        %s175 = scalar_lea.vmem [#allocation5], %s174
        // Predicated region
        $region29: #{tpu_custom_call.1} parent=23 // pred_check
          %p176 = pneg %p62
        $region30: #{tpu_custom_call.1} parent=23 // pred_check_branch
          %178 = sbr.rel (%p176) target = $region32
        $region31: #{tpu_custom_call.1} parent=23 // pred_region
          %s179 = smul.u32 8, %s18
          %s181 = ssub.s32 2048, 2048
          %182 = vsyncadd %s172, %s181
          %s183 = smul.addr %s179, 2
          %s184 = smul.addr %s183, 128
          %s185 = scalar_lea.hbm %s1, %s184
          %s186 = sshll.u32 %s175, 4
          %s187 = int_to_ptr.vmem [resolvable:$true] %s186
          %192 = dma.vmem_to_hbm [thread:$0]  %s187, 2048, %s185, %s172, 256, 256, 16
        $region32: #{tpu_custom_call.1} parent=23 // pred_fallthru
          _
      $region24: #{tpu_custom_call.1} parent=5 // pred_fallthru
        _
      %p193 = scmp.le.s32.totalorder 2, %s13
      // Predicated region
      $region33: #{tpu_custom_call.1} parent=5 // pred_check
        %p194 = pneg %p193
      $region34: #{tpu_custom_call.1} parent=5 // pred_check_branch
        %196 = sbr.rel (%p194) target = $region36
      $region35: #{tpu_custom_call.1} parent=5 // pred_region
        %s197 = ssub.s32 %s13, 2
        // Predicated region
        $region37: #{tpu_custom_call.1} parent=35 // pred_check
          %p198 = pneg %p68
        $region38: #{tpu_custom_call.1} parent=35 // pred_check_branch
          %200 = sbr.rel (%p198) target = $region40
        $region39: #{tpu_custom_call.1} parent=35 // pred_region
          %s201 = sand.u32 %s53, 1
          %s202 = scalar_lea.sflag [#allocation4], %s201
          %s203 = sand.u32 %s53, 1
          %s204 = smul.addr %s203, 128
          %s205 = scalar_lea.vmem [#allocation5], %s204
          %206 = dma.done %s202, 2048
        $region40: #{tpu_custom_call.1} parent=35 // pred_fallthru
          _
      $region36: #{tpu_custom_call.1} parent=5 // pred_fallthru
        _
    $region6: #{tpu_custom_call.1} parent=1 // loop_footer
      %s17 = sadd.s32 1, %s13
    $region7: #{tpu_custom_call.1} parent=1 // loop_footer_branch
      %12 = sbr.rel target = $region3
    $region8: #{tpu_custom_call.1} parent=1 // loop_exit
      _
    %207 = vsyncpa [#allocation3], 1
    %s208 = scalar_lea.sflag [#allocation3], 1
    %209 = vsyncpa %s208, 1
    %210 = vsyncpa [#allocation4], 1
    %s211 = scalar_lea.sflag [#allocation4], 1
    %212 = vsyncpa %s211, 1

</llo_original>
